<compile_context>
chip_gen: v6e
topology: v6e:2x2x1
jax: 0.10.0
libtpu: 0.0.40
codegen_flags: <defaults>
</compile_context>

<pallas_src>
import functools

import jax
import jax.numpy as jnp
from jax.experimental import pallas as pl
from jax.experimental.pallas import tpu as pltpu

L1_SIZE = 8
L2_SIZE = 8
L3_SIZE = 8


def _sigmoid(x):
    # Stable form: exp(-|x|) is in (0, 1], never overflows; exp goes to the EUP slot.
    e = jnp.exp(-jnp.abs(x))
    s = 1.0 / (1.0 + e)
    return jnp.where(x >= 0, s, 1.0 - s)


def decoder_kernel(xT_ref,
                   w1x_ref, b1_ref,
                   w2_ref, b2_ref,
                   w3_ref, b3_ref,
                   w4_ref, b4_ref,
                   oT_ref):
    # Transposed layout: every activation is (features, tile_n) -> N on the lane axis.
    x = xT_ref[...]                                                     # (k1, tile_n)
    h = _sigmoid(jnp.dot(w1x_ref[...], x,
                         preferred_element_type=jnp.float32) + b1_ref[...])
    h = _sigmoid(jnp.dot(w2_ref[...], h,
                         preferred_element_type=jnp.float32) + b2_ref[...])
    h = _sigmoid(jnp.dot(w3_ref[...], h,
                         preferred_element_type=jnp.float32) + b3_ref[...])
    o = jnp.dot(w4_ref[...], h, preferred_element_type=jnp.float32) + b4_ref[...]
    oT_ref[...] = o.astype(oT_ref.dtype)                                # (out_dim, tile_n)


@functools.partial(jax.jit, static_argnames=("tile_n",))
def decoder_forward(x_pred, z, params, *, tile_n=512):
    """x_pred: (N, x_dim) f32, z: (S,) f32.  Params in torch layout (out, in).

    Returns (N, out_dim) f32, identical to Decoder.forward(x_pred, z).
    """
    x_pred = jnp.asarray(x_pred, jnp.float32)
    z = jnp.asarray(z, jnp.float32)

    N, x_dim = x_pred.shape
    S = z.shape[0]
    out_dim = params["w4"].shape[0]
    assert tile_n % 128 == 0, "tile_n must be a multiple of 128 (lane width)"
    assert params["w1"].shape[1] == x_dim + S

    # Clamp the lane tile so tiny problems run as a single grid step; pad N to a
    # tile multiple (no divisibility requirement on N).
    n_up128 = -(-N // 128) * 128
    tile = min(tile_n, n_up128)
    n_pad = -(-N // tile) * tile
    grid_n = n_pad // tile

    # Fold z into the layer-1 bias (drops the xz concat / broadcast entirely).
    w1 = params["w1"]                                     # (L1, x_dim + S)
    w1x = w1[:, :x_dim]                                   # (L1, x_dim)
    b1_eff = w1[:, x_dim:] @ z[:, None] + params["b1"]    # (L1, 1), row-constant term

    # Pad the layer-1 contraction dim up to a sublane multiple (>= 8) for clean tiling.
    k1 = -(-x_dim // 8) * 8
    w1x = jnp.pad(w1x, ((0, 0), (0, k1 - x_dim)))

    # Transposed, lane-dense input: (k1, n_pad), data points on lanes.
    xT = jnp.pad(x_pred.T, ((0, k1 - x_dim), (0, n_pad - N)))

    def full_spec(shape):
        # Full-array block, constant index map -> stays resident in VMEM across the grid.
        return pl.BlockSpec(shape, lambda i, _s=shape: (0,) * len(_s))

    grid_spec = pltpu.PrefetchScalarGridSpec(
        num_scalar_prefetch=0,
        grid=(grid_n,),
        in_specs=[
            pl.BlockSpec((k1, tile), lambda i: (0, i)),        # x tile (data points on lanes)
            full_spec((L1_SIZE, k1)), full_spec((L1_SIZE, 1)),
            full_spec((L2_SIZE, L1_SIZE)), full_spec((L2_SIZE, 1)),
            full_spec((L3_SIZE, L2_SIZE)), full_spec((L3_SIZE, 1)),
            full_spec((out_dim, L3_SIZE)), full_spec((out_dim, 1)),
        ],
        out_specs=pl.BlockSpec((out_dim, tile), lambda i: (0, i)),
    )

    outT = pl.pallas_call(
        decoder_kernel,
        out_shape=jax.ShapeDtypeStruct((out_dim, n_pad), jnp.float32),
        grid_spec=grid_spec,
        compiler_params=pltpu.CompilerParams(
            dimension_semantics=("parallel",)),
    )(xT,
      w1x, b1_eff,
      params["w2"], params["b2"],
      params["w3"], params["b3"],
      params["w4"], params["b4"])

    return outT[:, :N].T                                      # (N, out_dim)


def init_params(key, in_dim, out_dim):
    """Torch-layout params: weights (out_features, in_features), biases (out_features, 1).

    Weights ~ normal_ (the module's init_func); biases follow torch's default Linear init.
    """
    ks = jax.random.split(key, 8)

    def lin(kw, kb, fin, fout):
        w = jax.random.normal(kw, (fout, fin), dtype=jnp.float32)
        bound = 1.0 / (float(fin) ** 0.5)
        b = jax.random.uniform(kb, (fout, 1), dtype=jnp.float32,
                               minval=-bound, maxval=bound)
        return w, b

    w1, b1 = lin(ks[0], ks[1], in_dim, L1_SIZE)
    w2, b2 = lin(ks[2], ks[3], L1_SIZE, L2_SIZE)
    w3, b3 = lin(ks[4], ks[5], L2_SIZE, L3_SIZE)
    w4, b4 = lin(ks[6], ks[7], L3_SIZE, out_dim)
    return dict(w1=w1, b1=b1, w2=w2, b2=b2, w3=w3, b3=b3, w4=w4, b4=b4)


def decoder_reference(x_pred, z, params):
    """Pure-JAX reference of the PyTorch forward (with the explicit concat)."""
    S = z.shape[0]
    N = x_pred.shape[0]
    zs = jnp.broadcast_to(z[:, None], (S, N)).T
    xz = jnp.concatenate([x_pred, zs], axis=1)
    h = jax.nn.sigmoid(xz @ params["w1"].T + params["b1"][:, 0])
    h = jax.nn.sigmoid(h @ params["w2"].T + params["b2"][:, 0])
    h = jax.nn.sigmoid(h @ params["w3"].T + params["b3"][:, 0])
    return h @ params["w4"].T + params["b4"][:, 0]


if __name__ == "__main__":
    key = jax.random.PRNGKey(0)
    k_x, k_z, k_p = jax.random.split(key, 3)

    N = 16       # number of x* prediction points
    x_dim = 4    # x feature dim
    S = 4        # length of the function-encoding vector z
    in_dim = x_dim + S
    out_dim = 2

    x_pred = jax.random.normal(k_x, (N, x_dim), dtype=jnp.float32)
    z = jax.random.normal(k_z, (S,), dtype=jnp.float32)
    params = init_params(k_p, in_dim, out_dim)

    out = decoder_forward(x_pred, z, params)
    out = jax.block_until_ready(out)

    ref = decoder_reference(x_pred, z, params)
    assert out.shape == (N, out_dim)
    assert jnp.allclose(out, ref, atol=1e-4, rtol=1e-4), "mismatch vs reference"

    print("KERNEL_OK")
</pallas_src>

<mosaic_0001>
module attributes {stable_mosaic.version = 11 : i64} {
  func.func @decoder_kernel(%arg0: i32, %arg1: memref<8x128xf32, #tpu.memory_space<vmem>>, %arg2: memref<8x8xf32, #tpu.memory_space<vmem>>, %arg3: memref<8x1xf32, #tpu.memory_space<vmem>>, %arg4: memref<8x8xf32, #tpu.memory_space<vmem>>, %arg5: memref<8x1xf32, #tpu.memory_space<vmem>>, %arg6: memref<8x8xf32, #tpu.memory_space<vmem>>, %arg7: memref<8x1xf32, #tpu.memory_space<vmem>>, %arg8: memref<2x8xf32, #tpu.memory_space<vmem>>, %arg9: memref<2x1xf32, #tpu.memory_space<vmem>>, %arg10: memref<2x128xf32, #tpu.memory_space<vmem>>) attributes {dimension_semantics = [#tpu.dimension_semantics<parallel>], iteration_bounds = array<i64: 1>, scalar_prefetch = 0 : i64, scratch_operands = 0 : i64, tpu.core_type = #tpu.core_type<tc>, window_params = [{transform_indices = @transform_0, window_bounds = array<i64: 8, 128>}, {pipeline_mode = #tpu.pipeline_mode<synchronous>, transform_indices = @transform_1, window_bounds = array<i64: 8, 8>}, {pipeline_mode = #tpu.pipeline_mode<synchronous>, transform_indices = @transform_2, window_bounds = array<i64: 8, 1>}, {pipeline_mode = #tpu.pipeline_mode<synchronous>, transform_indices = @transform_3, window_bounds = array<i64: 8, 8>}, {pipeline_mode = #tpu.pipeline_mode<synchronous>, transform_indices = @transform_4, window_bounds = array<i64: 8, 1>}, {pipeline_mode = #tpu.pipeline_mode<synchronous>, transform_indices = @transform_5, window_bounds = array<i64: 8, 8>}, {pipeline_mode = #tpu.pipeline_mode<synchronous>, transform_indices = @transform_6, window_bounds = array<i64: 8, 1>}, {pipeline_mode = #tpu.pipeline_mode<synchronous>, transform_indices = @transform_7, window_bounds = array<i64: 2, 8>}, {pipeline_mode = #tpu.pipeline_mode<synchronous>, transform_indices = @transform_8, window_bounds = array<i64: 2, 1>}, {transform_indices = @transform_9, window_bounds = array<i64: 2, 128>}]} {
    %c0 = arith.constant 0 : index
    %c0_0 = arith.constant 0 : index
    %0 = vector.load %arg1[%c0, %c0_0] : memref<8x128xf32, #tpu.memory_space<vmem>>, vector<8x128xf32>
    %c0_1 = arith.constant 0 : index
    %c0_2 = arith.constant 0 : index
    %1 = vector.load %arg2[%c0_1, %c0_2] : memref<8x8xf32, #tpu.memory_space<vmem>>, vector<8x8xf32>
    %cst = arith.constant dense<0.000000e+00> : vector<8x128xf32>
    %2 = tpu.matmul %1, %0, %cst {dimension_numbers = #tpu.dot_dimension_numbers<[1], [0], [0], [1], [0, 0, 1, 1], [], []>} : vector<8x8xf32>, vector<8x128xf32>, vector<8x128xf32> -> vector<8x128xf32>
    %c0_3 = arith.constant 0 : index
    %c0_4 = arith.constant 0 : index
    %3 = vector.load %arg3[%c0_3, %c0_4] : memref<8x1xf32, #tpu.memory_space<vmem>>, vector<8x1xf32>
    %4 = vector.broadcast %3 : vector<8x1xf32> to vector<8x128xf32>
    %5 = arith.addf %2, %4 : vector<8x128xf32>
    %6 = math.absf %5 : vector<8x128xf32>
    %cst_5 = arith.constant 0.000000e+00 : f32
    %7 = vector.broadcast %cst_5 : f32 to vector<8x128xf32>
    %8 = arith.subf %7, %6 : vector<8x128xf32>
    %9 = math.exp %8 : vector<8x128xf32>
    %cst_6 = arith.constant 1.000000e+00 : f32
    %10 = vector.broadcast %cst_6 : f32 to vector<8x128xf32>
    %11 = arith.addf %10, %9 : vector<8x128xf32>
    %cst_7 = arith.constant 1.000000e+00 : f32
    %12 = vector.broadcast %cst_7 : f32 to vector<8x128xf32>
    %13 = arith.divf %12, %11 : vector<8x128xf32>
    %cst_8 = arith.constant 0.000000e+00 : f32
    %14 = vector.broadcast %cst_8 : f32 to vector<8x128xf32>
    %15 = arith.cmpf oge, %5, %14 : vector<8x128xf32>
    %cst_9 = arith.constant 1.000000e+00 : f32
    %16 = vector.broadcast %cst_9 : f32 to vector<8x128xf32>
    %17 = arith.subf %16, %13 : vector<8x128xf32>
    %18 = arith.select %15, %13, %17 : vector<8x128xi1>, vector<8x128xf32>
    %c0_10 = arith.constant 0 : index
    %c0_11 = arith.constant 0 : index
    %19 = vector.load %arg4[%c0_10, %c0_11] : memref<8x8xf32, #tpu.memory_space<vmem>>, vector<8x8xf32>
    %cst_12 = arith.constant dense<0.000000e+00> : vector<8x128xf32>
    %20 = tpu.matmul %19, %18, %cst_12 {dimension_numbers = #tpu.dot_dimension_numbers<[1], [0], [0], [1], [0, 0, 1, 1], [], []>} : vector<8x8xf32>, vector<8x128xf32>, vector<8x128xf32> -> vector<8x128xf32>
    %c0_13 = arith.constant 0 : index
    %c0_14 = arith.constant 0 : index
    %21 = vector.load %arg5[%c0_13, %c0_14] : memref<8x1xf32, #tpu.memory_space<vmem>>, vector<8x1xf32>
    %22 = vector.broadcast %21 : vector<8x1xf32> to vector<8x128xf32>
    %23 = arith.addf %20, %22 : vector<8x128xf32>
    %24 = math.absf %23 : vector<8x128xf32>
    %cst_15 = arith.constant 0.000000e+00 : f32
    %25 = vector.broadcast %cst_15 : f32 to vector<8x128xf32>
    %26 = arith.subf %25, %24 : vector<8x128xf32>
    %27 = math.exp %26 : vector<8x128xf32>
    %cst_16 = arith.constant 1.000000e+00 : f32
    %28 = vector.broadcast %cst_16 : f32 to vector<8x128xf32>
    %29 = arith.addf %28, %27 : vector<8x128xf32>
    %cst_17 = arith.constant 1.000000e+00 : f32
    %30 = vector.broadcast %cst_17 : f32 to vector<8x128xf32>
    %31 = arith.divf %30, %29 : vector<8x128xf32>
    %cst_18 = arith.constant 0.000000e+00 : f32
    %32 = vector.broadcast %cst_18 : f32 to vector<8x128xf32>
    %33 = arith.cmpf oge, %23, %32 : vector<8x128xf32>
    %cst_19 = arith.constant 1.000000e+00 : f32
    %34 = vector.broadcast %cst_19 : f32 to vector<8x128xf32>
    %35 = arith.subf %34, %31 : vector<8x128xf32>
    %36 = arith.select %33, %31, %35 : vector<8x128xi1>, vector<8x128xf32>
    %c0_20 = arith.constant 0 : index
    %c0_21 = arith.constant 0 : index
    %37 = vector.load %arg6[%c0_20, %c0_21] : memref<8x8xf32, #tpu.memory_space<vmem>>, vector<8x8xf32>
    %cst_22 = arith.constant dense<0.000000e+00> : vector<8x128xf32>
    %38 = tpu.matmul %37, %36, %cst_22 {dimension_numbers = #tpu.dot_dimension_numbers<[1], [0], [0], [1], [0, 0, 1, 1], [], []>} : vector<8x8xf32>, vector<8x128xf32>, vector<8x128xf32> -> vector<8x128xf32>
    %c0_23 = arith.constant 0 : index
    %c0_24 = arith.constant 0 : index
    %39 = vector.load %arg7[%c0_23, %c0_24] : memref<8x1xf32, #tpu.memory_space<vmem>>, vector<8x1xf32>
    %40 = vector.broadcast %39 : vector<8x1xf32> to vector<8x128xf32>
    %41 = arith.addf %38, %40 : vector<8x128xf32>
    %42 = math.absf %41 : vector<8x128xf32>
    %cst_25 = arith.constant 0.000000e+00 : f32
    %43 = vector.broadcast %cst_25 : f32 to vector<8x128xf32>
    %44 = arith.subf %43, %42 : vector<8x128xf32>
    %45 = math.exp %44 : vector<8x128xf32>
    %cst_26 = arith.constant 1.000000e+00 : f32
    %46 = vector.broadcast %cst_26 : f32 to vector<8x128xf32>
    %47 = arith.addf %46, %45 : vector<8x128xf32>
    %cst_27 = arith.constant 1.000000e+00 : f32
    %48 = vector.broadcast %cst_27 : f32 to vector<8x128xf32>
    %49 = arith.divf %48, %47 : vector<8x128xf32>
    %cst_28 = arith.constant 0.000000e+00 : f32
    %50 = vector.broadcast %cst_28 : f32 to vector<8x128xf32>
    %51 = arith.cmpf oge, %41, %50 : vector<8x128xf32>
    %cst_29 = arith.constant 1.000000e+00 : f32
    %52 = vector.broadcast %cst_29 : f32 to vector<8x128xf32>
    %53 = arith.subf %52, %49 : vector<8x128xf32>
    %54 = arith.select %51, %49, %53 : vector<8x128xi1>, vector<8x128xf32>
    %c0_30 = arith.constant 0 : index
    %c0_31 = arith.constant 0 : index
    %55 = vector.load %arg8[%c0_30, %c0_31] : memref<2x8xf32, #tpu.memory_space<vmem>>, vector<2x8xf32>
    %cst_32 = arith.constant dense<0.000000e+00> : vector<2x128xf32>
    %56 = tpu.matmul %55, %54, %cst_32 {dimension_numbers = #tpu.dot_dimension_numbers<[1], [0], [0], [1], [0, 0, 1, 1], [], []>} : vector<2x8xf32>, vector<8x128xf32>, vector<2x128xf32> -> vector<2x128xf32>
    %c0_33 = arith.constant 0 : index
    %c0_34 = arith.constant 0 : index
    %57 = vector.load %arg9[%c0_33, %c0_34] : memref<2x1xf32, #tpu.memory_space<vmem>>, vector<2x1xf32>
    %58 = vector.broadcast %57 : vector<2x1xf32> to vector<2x128xf32>
    %59 = arith.addf %56, %58 : vector<2x128xf32>
    %c0_35 = arith.constant 0 : index
    %c0_36 = arith.constant 0 : index
    %60 = vector.load %arg10[%c0_35, %c0_36] : memref<2x128xf32, #tpu.memory_space<vmem>>, vector<2x128xf32>
    tpu.vector_store %arg10[%c0_35, %c0_36], %59 {strides = array<i32>} : memref<2x128xf32, #tpu.memory_space<vmem>>, vector<2x128xf32>,
    return
  }
  func.func @transform_0(%arg0: i32) -> (i32, i32) {
    %c0_i32 = arith.constant 0 : i32
    %c0_i32_0 = arith.constant 0 : i32
    return %c0_i32, %arg0 : i32, i32
  }
  func.func @transform_1(%arg0: i32) -> (i32, i32) {
    %c0_i32 = arith.constant 0 : i32
    %c0_i32_0 = arith.constant 0 : i32
    %c0_i32_1 = arith.constant 0 : i32
    return %c0_i32, %c0_i32_0 : i32, i32
  }
  func.func @transform_2(%arg0: i32) -> (i32, i32) {
    %c0_i32 = arith.constant 0 : i32
    %c0_i32_0 = arith.constant 0 : i32
    %c0_i32_1 = arith.constant 0 : i32
    return %c0_i32, %c0_i32_0 : i32, i32
  }
  func.func @transform_3(%arg0: i32) -> (i32, i32) {
    %c0_i32 = arith.constant 0 : i32
    %c0_i32_0 = arith.constant 0 : i32
    %c0_i32_1 = arith.constant 0 : i32
    return %c0_i32, %c0_i32_0 : i32, i32
  }
  func.func @transform_4(%arg0: i32) -> (i32, i32) {
    %c0_i32 = arith.constant 0 : i32
    %c0_i32_0 = arith.constant 0 : i32
    %c0_i32_1 = arith.constant 0 : i32
    return %c0_i32, %c0_i32_0 : i32, i32
  }
  func.func @transform_5(%arg0: i32) -> (i32, i32) {
    %c0_i32 = arith.constant 0 : i32
    %c0_i32_0 = arith.constant 0 : i32
    %c0_i32_1 = arith.constant 0 : i32
    return %c0_i32, %c0_i32_0 : i32, i32
  }
  func.func @transform_6(%arg0: i32) -> (i32, i32) {
    %c0_i32 = arith.constant 0 : i32
    %c0_i32_0 = arith.constant 0 : i32
    %c0_i32_1 = arith.constant 0 : i32
    return %c0_i32, %c0_i32_0 : i32, i32
  }
  func.func @transform_7(%arg0: i32) -> (i32, i32) {
    %c0_i32 = arith.constant 0 : i32
    %c0_i32_0 = arith.constant 0 : i32
    %c0_i32_1 = arith.constant 0 : i32
    return %c0_i32, %c0_i32_0 : i32, i32
  }
  func.func @transform_8(%arg0: i32) -> (i32, i32) {
    %c0_i32 = arith.constant 0 : i32
    %c0_i32_0 = arith.constant 0 : i32
    %c0_i32_1 = arith.constant 0 : i32
    return %c0_i32, %c0_i32_0 : i32, i32
  }
  func.func @transform_9(%arg0: i32) -> (i32, i32) {
    %c0_i32 = arith.constant 0 : i32
    %c0_i32_0 = arith.constant 0 : i32
    return %c0_i32, %arg0 : i32, i32
  }
}

</mosaic_0001>

<llo_original>
// kernel: decoder_forward.1
$region0: #{decoder_forward.1}
  #allocation0 [shape = 'u32[]', space=smem, size = 0x4, offset = 0x4, fixed_abs, tag = 'smem constant byte address 0x4 - core index']
  #allocation1 [shape = 'u32[144,128]{1,0:T(1,128)}', space=vmem, size = 0x12000, scoped, tag = 'internal scratch']
  %s0 = inlined_call_operand.vmem [shape: f32[8,128], index: 0, kind: input, shape index: {}]
  %s1 = inlined_call_operand.vmem [shape: f32[8,8], index: 1, kind: input, shape index: {}]
  %s2 = inlined_call_operand.vmem [shape: f32[8,1], index: 2, kind: input, shape index: {}]
  %s3 = inlined_call_operand.vmem [shape: f32[8,8], index: 3, kind: input, shape index: {}]
  %s4 = inlined_call_operand.vmem [shape: f32[8,1], index: 4, kind: input, shape index: {}]
  %s5 = inlined_call_operand.vmem [shape: f32[8,8], index: 5, kind: input, shape index: {}]
  %s6 = inlined_call_operand.vmem [shape: f32[8,1], index: 6, kind: input, shape index: {}]
  %s7 = inlined_call_operand.vmem [shape: f32[2,8], index: 7, kind: input, shape index: {}]
  %s8 = inlined_call_operand.vmem [shape: f32[2,1], index: 8, kind: input, shape index: {}]
  %s9 = inlined_call_operand.vmem [shape: f32[2,128], index: 9, kind: output, shape index: {}]
  %s10 = sld [smem:[#allocation0]]
  $region46: #{decoder_forward.1} parent=0
    _
  %s12 = ssub.s32 1, %s10
  %s13 = scalar_select 0, %s12, %s10
  // Predicated region
  $region2: #{decoder_forward.1} parent=0 // pred_check
    _
  $region3: #{decoder_forward.1} parent=0 // pred_check_branch
    %15 = sbr.rel (0) target = $region5
  $region4: #{decoder_forward.1} parent=0 // pred_region
    _
  $region5: #{decoder_forward.1} parent=0 // pred_fallthru
    _
  // Predicated region
  $region6: #{decoder_forward.1} parent=0 // pred_check
    _
  $region7: #{decoder_forward.1} parent=0 // pred_check_branch
    %17 = sbr.rel (0) target = $region9
  $region8: #{decoder_forward.1} parent=0 // pred_region
    _
  $region9: #{decoder_forward.1} parent=0 // pred_fallthru
    _
  // Predicated region
  $region10: #{decoder_forward.1} parent=0 // pred_check
    _
  $region11: #{decoder_forward.1} parent=0 // pred_check_branch
    %19 = sbr.rel (0) target = $region13
  $region12: #{decoder_forward.1} parent=0 // pred_region
    _
  $region13: #{decoder_forward.1} parent=0 // pred_fallthru
    _
  // Predicated region
  $region14: #{decoder_forward.1} parent=0 // pred_check
    _
  $region15: #{decoder_forward.1} parent=0 // pred_check_branch
    %21 = sbr.rel (0) target = $region17
  $region16: #{decoder_forward.1} parent=0 // pred_region
    _
  $region17: #{decoder_forward.1} parent=0 // pred_fallthru
    _
  // Predicated region
  $region18: #{decoder_forward.1} parent=0 // pred_check
    _
  $region19: #{decoder_forward.1} parent=0 // pred_check_branch
    %23 = sbr.rel (0) target = $region21
  $region20: #{decoder_forward.1} parent=0 // pred_region
    _
  $region21: #{decoder_forward.1} parent=0 // pred_fallthru
    _
  // Predicated region
  $region22: #{decoder_forward.1} parent=0 // pred_check
    _
  $region23: #{decoder_forward.1} parent=0 // pred_check_branch
    %25 = sbr.rel (0) target = $region25
  $region24: #{decoder_forward.1} parent=0 // pred_region
    _
  $region25: #{decoder_forward.1} parent=0 // pred_fallthru
    _
  // Predicated region
  $region26: #{decoder_forward.1} parent=0 // pred_check
    _
  $region27: #{decoder_forward.1} parent=0 // pred_check_branch
    %27 = sbr.rel (0) target = $region29
  $region28: #{decoder_forward.1} parent=0 // pred_region
    _
  $region29: #{decoder_forward.1} parent=0 // pred_fallthru
    _
  // Predicated region
  $region30: #{decoder_forward.1} parent=0 // pred_check
    _
  $region31: #{decoder_forward.1} parent=0 // pred_check_branch
    %29 = sbr.rel (0) target = $region33
  $region32: #{decoder_forward.1} parent=0 // pred_region
    _
  $region33: #{decoder_forward.1} parent=0 // pred_fallthru
    _
  // Predicated region
  $region34: #{decoder_forward.1} parent=0 // pred_check
    _
  $region35: #{decoder_forward.1} parent=0 // pred_check_branch
    %31 = sbr.rel (0) target = $region37
  $region36: #{decoder_forward.1} parent=0 // pred_region
    _
  $region37: #{decoder_forward.1} parent=0 // pred_fallthru
    _
  %v32 = vld [vmem:[%s0] sm:$0xff]
  %v33 = vld [vmem:[%s1] sm:$0xff]
  %v34 = vld [vmem:[%s2] sm:$0xff]
  %36 = vset.pattern.permute.xlu0 0
  %37 = vperm.xlu0 %36, %v34
  %v38 = vpop.permute.xlu0 %37
  %vm40 = vcmask 64512
  %v42 = vsel %vm40, %v33, 0
  %44 = vmatprep.subr.mxu0 0.0
  %45 = vmatpush1.msra.mxu0 0.0
  %46 = vmatprep.subr.mxu0 0.0
  %47 = vmatpush1.msra.mxu0 0.0
  %48 = vmatprep.subr.mxu0 0.0
  %49 = vmatpush1.msra.mxu0 0.0
  %50 = vmatprep.subr.mxu0 0.0
  %51 = vmatpush1.msra.mxu0 0.0
  %52 = vmatprep.subr.mxu0 0.0
  %53 = vmatpush1.msra.mxu0 0.0
  %54 = vmatprep.subr.mxu0 0.0
  %55 = vmatpush1.msra.mxu0 0.0
  %56 = vmatprep.subr.mxu0 0.0
  %57 = vmatpush1.msra.mxu0 0.0
  %58 = vmatprep.subr.mxu0 0.0
  %59 = vmatpush1.msra.mxu0 0.0
  %60 = vmatprep.subr.mxu0 0.0
  %61 = vmatpush1.msra.mxu0 0.0
  %62 = vmatprep.subr.mxu0 0.0
  %63 = vmatpush1.msra.mxu0 0.0
  %64 = vmatprep.subr.mxu0 0.0
  %65 = vmatpush1.msra.mxu0 0.0
  %66 = vmatprep.subr.mxu0 0.0
  %67 = vmatpush1.msra.mxu0 0.0
  %68 = vmatprep.subr.mxu0 0.0
  %69 = vmatpush1.msra.mxu0 0.0
  %70 = vmatprep.subr.mxu0 0.0
  %71 = vmatpush1.msra.mxu0 0.0
  %72 = vmatprep.subr.mxu0 0.0
  %73 = vmatpush1.msra.mxu0 0.0
  %74 = vmatprep.subr.mxu0 0.0
  %75 = vmatpush1.msra.mxu0 %v32
  %76 = vmatprep.subr.mxu0 0.0
  %77 = vmatpush2.msra.mxu0 0.0
  %78 = vmatprep.subr.mxu0 0.0
  %79 = vmatpush2.msra.mxu0 0.0
  %80 = vmatprep.subr.mxu0 0.0
  %81 = vmatpush2.msra.mxu0 0.0
  %82 = vmatprep.subr.mxu0 0.0
  %83 = vmatpush2.msra.mxu0 0.0
  %84 = vmatprep.subr.mxu0 0.0
  %85 = vmatpush2.msra.mxu0 0.0
  %86 = vmatprep.subr.mxu0 0.0
  %87 = vmatpush2.msra.mxu0 0.0
  %88 = vmatprep.subr.mxu0 0.0
  %89 = vmatpush2.msra.mxu0 0.0
  %90 = vmatprep.subr.mxu0 0.0
  %91 = vmatpush2.msra.mxu0 0.0
  %92 = vmatprep.subr.mxu0 0.0
  %93 = vmatpush2.msra.mxu0 0.0
  %94 = vmatprep.subr.mxu0 0.0
  %95 = vmatpush2.msra.mxu0 0.0
  %96 = vmatprep.subr.mxu0 0.0
  %97 = vmatpush2.msra.mxu0 0.0
  %98 = vmatprep.subr.mxu0 0.0
  %99 = vmatpush2.msra.mxu0 0.0
  %100 = vmatprep.subr.mxu0 0.0
  %101 = vmatpush2.msra.mxu0 0.0
  %102 = vmatprep.subr.mxu0 0.0
  %103 = vmatpush2.msra.mxu0 0.0
  %104 = vmatprep.subr.mxu0 0.0
  %105 = vmatpush2.msra.mxu0 0.0
  %106 = vmatprep.subr.mxu0 0.0
  %107 = vmatpush2.msra.mxu0 0.0
  %108 = vmatprep.mubr.f32.mxu0 0.0
  %109 = vmatmul.mubr.f32.gmra.mxu0 %v42
  %v110 = vpop.f32.mrf.mxu0
  %v111 = vadd.f32 %v38, %v110
  %v112 = vpop.f32.mrf.mxu0
  %113 = vdwg.mxu0
  %v114 = vand.u32 2147483647, %v111
  %v115 = vsub.f32 0.0, %v114
  %v116 = vmul.f32 %v115, 1.442695
  %v117 = vpow.pop %v116
  %v118 = vadd.f32 %v117, 1.0
  %v119 = vrcp.pop %v118
  %v120 = vmul.f32 1.0, %v119
  %vm121 = vcmp.ge.f32.partialorder %v111, 0.0
  %v122 = vsub.f32 1.0, %v120
  %v123 = vsel %vm121, %v120, %v122
  %v124 = vld [vmem:[%s3] sm:$0xff]
  %v125 = vld [vmem:[%s4] sm:$0xff]
  %127 = vset.pattern.permute.xlu0 0
  %128 = vperm.xlu0 %127, %v125
  %v129 = vpop.permute.xlu0 %128
  %v132 = vsel %vm40, %v124, 0
  %134 = vmatprep.subr.mxu0 0.0
  %135 = vmatpush1.msra.mxu0 0.0
  %136 = vmatprep.subr.mxu0 0.0
  %137 = vmatpush1.msra.mxu0 0.0
  %138 = vmatprep.subr.mxu0 0.0
  %139 = vmatpush1.msra.mxu0 0.0
  %140 = vmatprep.subr.mxu0 0.0
  %141 = vmatpush1.msra.mxu0 0.0
  %142 = vmatprep.subr.mxu0 0.0
  %143 = vmatpush1.msra.mxu0 0.0
  %144 = vmatprep.subr.mxu0 0.0
  %145 = vmatpush1.msra.mxu0 0.0
  %146 = vmatprep.subr.mxu0 0.0
  %147 = vmatpush1.msra.mxu0 0.0
  %148 = vmatprep.subr.mxu0 0.0
  %149 = vmatpush1.msra.mxu0 0.0
  %150 = vmatprep.subr.mxu0 0.0
  %151 = vmatpush1.msra.mxu0 0.0
  %152 = vmatprep.subr.mxu0 0.0
  %153 = vmatpush1.msra.mxu0 0.0
  %154 = vmatprep.subr.mxu0 0.0
  %155 = vmatpush1.msra.mxu0 0.0
  %156 = vmatprep.subr.mxu0 0.0
  %157 = vmatpush1.msra.mxu0 0.0
  %158 = vmatprep.subr.mxu0 0.0
  %159 = vmatpush1.msra.mxu0 0.0
  %160 = vmatprep.subr.mxu0 0.0
  %161 = vmatpush1.msra.mxu0 0.0
  %162 = vmatprep.subr.mxu0 0.0
  %163 = vmatpush1.msra.mxu0 0.0
  %164 = vmatprep.subr.mxu0 0.0
  %165 = vmatpush1.msra.mxu0 %v123
  %166 = vmatprep.subr.mxu0 0.0
  %167 = vmatpush2.msra.mxu0 0.0
  %168 = vmatprep.subr.mxu0 0.0
  %169 = vmatpush2.msra.mxu0 0.0
  %170 = vmatprep.subr.mxu0 0.0
  %171 = vmatpush2.msra.mxu0 0.0
  %172 = vmatprep.subr.mxu0 0.0
  %173 = vmatpush2.msra.mxu0 0.0
  %174 = vmatprep.subr.mxu0 0.0
  %175 = vmatpush2.msra.mxu0 0.0
  %176 = vmatprep.subr.mxu0 0.0
  %177 = vmatpush2.msra.mxu0 0.0
  %178 = vmatprep.subr.mxu0 0.0
  %179 = vmatpush2.msra.mxu0 0.0
  %180 = vmatprep.subr.mxu0 0.0
  %181 = vmatpush2.msra.mxu0 0.0
  %182 = vmatprep.subr.mxu0 0.0
  %183 = vmatpush2.msra.mxu0 0.0
  %184 = vmatprep.subr.mxu0 0.0
  %185 = vmatpush2.msra.mxu0 0.0
  %186 = vmatprep.subr.mxu0 0.0
  %187 = vmatpush2.msra.mxu0 0.0
  %188 = vmatprep.subr.mxu0 0.0
  %189 = vmatpush2.msra.mxu0 0.0
  %190 = vmatprep.subr.mxu0 0.0
  %191 = vmatpush2.msra.mxu0 0.0
  %192 = vmatprep.subr.mxu0 0.0
  %193 = vmatpush2.msra.mxu0 0.0
  %194 = vmatprep.subr.mxu0 0.0
  %195 = vmatpush2.msra.mxu0 0.0
  %196 = vmatprep.subr.mxu0 0.0
  %197 = vmatpush2.msra.mxu0 0.0
  %198 = vmatprep.mubr.f32.mxu0 0.0
  %199 = vmatmul.mubr.f32.gmra.mxu0 %v132
  %v200 = vpop.f32.mrf.mxu0
  %v201 = vadd.f32 %v129, %v200
  %v202 = vpop.f32.mrf.mxu0
  %203 = vdwg.mxu0
  %v204 = vand.u32 2147483647, %v201
  %v205 = vsub.f32 0.0, %v204
  %v206 = vmul.f32 %v205, 1.442695
  %v207 = vpow.pop %v206
  %v208 = vadd.f32 %v207, 1.0
  %v209 = vrcp.pop %v208
  %v210 = vmul.f32 1.0, %v209
  %vm211 = vcmp.ge.f32.partialorder %v201, 0.0
  %v212 = vsub.f32 1.0, %v210
  %v213 = vsel %vm211, %v210, %v212
  %v214 = vld [vmem:[%s5] sm:$0xff]
  %v215 = vld [vmem:[%s6] sm:$0xff]
  %217 = vset.pattern.permute.xlu0 0
  %218 = vperm.xlu0 %217, %v215
  %v219 = vpop.permute.xlu0 %218
  %v222 = vsel %vm40, %v214, 0
  %224 = vmatprep.subr.mxu0 0.0
  %225 = vmatpush1.msra.mxu0 0.0
  %226 = vmatprep.subr.mxu0 0.0
  %227 = vmatpush1.msra.mxu0 0.0
  %228 = vmatprep.subr.mxu0 0.0
  %229 = vmatpush1.msra.mxu0 0.0
  %230 = vmatprep.subr.mxu0 0.0
  %231 = vmatpush1.msra.mxu0 0.0
  %232 = vmatprep.subr.mxu0 0.0
  %233 = vmatpush1.msra.mxu0 0.0
  %234 = vmatprep.subr.mxu0 0.0
  %235 = vmatpush1.msra.mxu0 0.0
  %236 = vmatprep.subr.mxu0 0.0
  %237 = vmatpush1.msra.mxu0 0.0
  %238 = vmatprep.subr.mxu0 0.0
  %239 = vmatpush1.msra.mxu0 0.0
  %240 = vmatprep.subr.mxu0 0.0
  %241 = vmatpush1.msra.mxu0 0.0
  %242 = vmatprep.subr.mxu0 0.0
  %243 = vmatpush1.msra.mxu0 0.0
  %244 = vmatprep.subr.mxu0 0.0
  %245 = vmatpush1.msra.mxu0 0.0
  %246 = vmatprep.subr.mxu0 0.0
  %247 = vmatpush1.msra.mxu0 0.0
  %248 = vmatprep.subr.mxu0 0.0
  %249 = vmatpush1.msra.mxu0 0.0
  %250 = vmatprep.subr.mxu0 0.0
  %251 = vmatpush1.msra.mxu0 0.0
  %252 = vmatprep.subr.mxu0 0.0
  %253 = vmatpush1.msra.mxu0 0.0
  %254 = vmatprep.subr.mxu0 0.0
  %255 = vmatpush1.msra.mxu0 %v213
  %256 = vmatprep.subr.mxu0 0.0
  %257 = vmatpush2.msra.mxu0 0.0
  %258 = vmatprep.subr.mxu0 0.0
  %259 = vmatpush2.msra.mxu0 0.0
  %260 = vmatprep.subr.mxu0 0.0
  %261 = vmatpush2.msra.mxu0 0.0
  %262 = vmatprep.subr.mxu0 0.0
  %263 = vmatpush2.msra.mxu0 0.0
  %264 = vmatprep.subr.mxu0 0.0
  %265 = vmatpush2.msra.mxu0 0.0
  %266 = vmatprep.subr.mxu0 0.0
  %267 = vmatpush2.msra.mxu0 0.0
  %268 = vmatprep.subr.mxu0 0.0
  %269 = vmatpush2.msra.mxu0 0.0
  %270 = vmatprep.subr.mxu0 0.0
  %271 = vmatpush2.msra.mxu0 0.0
  %272 = vmatprep.subr.mxu0 0.0
  %273 = vmatpush2.msra.mxu0 0.0
  %274 = vmatprep.subr.mxu0 0.0
  %275 = vmatpush2.msra.mxu0 0.0
  %276 = vmatprep.subr.mxu0 0.0
  %277 = vmatpush2.msra.mxu0 0.0
  %278 = vmatprep.subr.mxu0 0.0
  %279 = vmatpush2.msra.mxu0 0.0
  %280 = vmatprep.subr.mxu0 0.0
  %281 = vmatpush2.msra.mxu0 0.0
  %282 = vmatprep.subr.mxu0 0.0
  %283 = vmatpush2.msra.mxu0 0.0
  %284 = vmatprep.subr.mxu0 0.0
  %285 = vmatpush2.msra.mxu0 0.0
  %286 = vmatprep.subr.mxu0 0.0
  %287 = vmatpush2.msra.mxu0 0.0
  %288 = vmatprep.mubr.f32.mxu0 0.0
  %289 = vmatmul.mubr.f32.gmra.mxu0 %v222
  %v290 = vpop.f32.mrf.mxu0
  %v291 = vadd.f32 %v219, %v290
  %v292 = vpop.f32.mrf.mxu0
  %293 = vdwg.mxu0
  %v294 = vand.u32 2147483647, %v291
  %v295 = vsub.f32 0.0, %v294
  %v296 = vmul.f32 %v295, 1.442695
  %v297 = vpow.pop %v296
  %v298 = vadd.f32 %v297, 1.0
  %v299 = vrcp.pop %v298
  %v300 = vmul.f32 1.0, %v299
  %vm301 = vcmp.ge.f32.partialorder %v291, 0.0
  %v302 = vsub.f32 1.0, %v300
  %v303 = vsel %vm301, %v300, %v302
  %v304 = vld [vmem:[%s7] sm:$0x3]
  %v305 = vld [vmem:[%s8] sm:$0x3]
  %307 = vset.pattern.permute.xlu0 0
  %308 = vperm.xlu0 %307, %v305
  %v309 = vpop.permute.xlu0 %308
  %v312 = vsel %vm40, %v304, 0
  %314 = vmatprep.subr.mxu0 0.0
  %315 = vmatpush1.msra.mxu0 0.0
  %316 = vmatprep.subr.mxu0 0.0
  %317 = vmatpush1.msra.mxu0 0.0
  %318 = vmatprep.subr.mxu0 0.0
  %319 = vmatpush1.msra.mxu0 0.0
  %320 = vmatprep.subr.mxu0 0.0
  %321 = vmatpush1.msra.mxu0 0.0
  %322 = vmatprep.subr.mxu0 0.0
  %323 = vmatpush1.msra.mxu0 0.0
  %324 = vmatprep.subr.mxu0 0.0
  %325 = vmatpush1.msra.mxu0 0.0
  %326 = vmatprep.subr.mxu0 0.0
  %327 = vmatpush1.msra.mxu0 0.0
  %328 = vmatprep.subr.mxu0 0.0
  %329 = vmatpush1.msra.mxu0 0.0
  %330 = vmatprep.subr.mxu0 0.0
  %331 = vmatpush1.msra.mxu0 0.0
  %332 = vmatprep.subr.mxu0 0.0
  %333 = vmatpush1.msra.mxu0 0.0
  %334 = vmatprep.subr.mxu0 0.0
  %335 = vmatpush1.msra.mxu0 0.0
  %336 = vmatprep.subr.mxu0 0.0
  %337 = vmatpush1.msra.mxu0 0.0
  %338 = vmatprep.subr.mxu0 0.0
  %339 = vmatpush1.msra.mxu0 0.0
  %340 = vmatprep.subr.mxu0 0.0
  %341 = vmatpush1.msra.mxu0 0.0
  %342 = vmatprep.subr.mxu0 0.0
  %343 = vmatpush1.msra.mxu0 0.0
  %344 = vmatprep.subr.mxu0 0.0
  %345 = vmatpush1.msra.mxu0 %v303
  %346 = vmatprep.subr.mxu0 0.0
  %347 = vmatpush2.msra.mxu0 0.0
  %348 = vmatprep.subr.mxu0 0.0
  %349 = vmatpush2.msra.mxu0 0.0
  %350 = vmatprep.subr.mxu0 0.0
  %351 = vmatpush2.msra.mxu0 0.0
  %352 = vmatprep.subr.mxu0 0.0
  %353 = vmatpush2.msra.mxu0 0.0
  %354 = vmatprep.subr.mxu0 0.0
  %355 = vmatpush2.msra.mxu0 0.0
  %356 = vmatprep.subr.mxu0 0.0
  %357 = vmatpush2.msra.mxu0 0.0
  %358 = vmatprep.subr.mxu0 0.0
  %359 = vmatpush2.msra.mxu0 0.0
  %360 = vmatprep.subr.mxu0 0.0
  %361 = vmatpush2.msra.mxu0 0.0
  %362 = vmatprep.subr.mxu0 0.0
  %363 = vmatpush2.msra.mxu0 0.0
  %364 = vmatprep.subr.mxu0 0.0
  %365 = vmatpush2.msra.mxu0 0.0
  %366 = vmatprep.subr.mxu0 0.0
  %367 = vmatpush2.msra.mxu0 0.0
  %368 = vmatprep.subr.mxu0 0.0
  %369 = vmatpush2.msra.mxu0 0.0
  %370 = vmatprep.subr.mxu0 0.0
  %371 = vmatpush2.msra.mxu0 0.0
  %372 = vmatprep.subr.mxu0 0.0
  %373 = vmatpush2.msra.mxu0 0.0
  %374 = vmatprep.subr.mxu0 0.0
  %375 = vmatpush2.msra.mxu0 0.0
  %376 = vmatprep.subr.mxu0 0.0
  %377 = vmatpush2.msra.mxu0 0.0
  %378 = vmatprep.mubr.f32.mxu0 0.0
  %379 = vmatmul.mubr.f32.gmra.mxu0 %v312
  %v380 = vpop.f32.mrf.mxu0
  %v381 = vadd.f32 %v309, %v380
  %v382 = vpop.f32.mrf.mxu0
  %383 = vdwg.mxu0
  %384 = vst [vmem:[%s9] sm:$0x3] %v381
  // Predicated region
  $region38: #{decoder_forward.1} parent=0 // pred_check
    _
  $region39: #{decoder_forward.1} parent=0 // pred_check_branch
    %386 = sbr.rel (0) target = $region41
  $region40: #{decoder_forward.1} parent=0 // pred_region
    _
  $region41: #{decoder_forward.1} parent=0 // pred_fallthru
    _
  // Predicated region
  $region42: #{decoder_forward.1} parent=0 // pred_check
    _
  $region43: #{decoder_forward.1} parent=0 // pred_check_branch
    %388 = sbr.rel (0) target = $region45
  $region44: #{decoder_forward.1} parent=0 // pred_region
    _
  $region45: #{decoder_forward.1} parent=0 // pred_fallthru
    _

</llo_original>
